<compile_context>
chip_gen: v7x
topology: tpu7x:2x2x1
jax: 0.10.0
libtpu: 0.0.40
codegen_flags: <defaults>
</compile_context>

<pallas_src>
import functools

import jax
import jax.numpy as jnp
from jax.experimental import pallas as pl
from jax.experimental.pallas import tpu as pltpu


def _round_up(x, m):
    return ((x + m - 1) // m) * m


def _net_ann_kernel(x_ref, w1_ref, b1_ref, w2_ref, b2_ref, o_ref):
    # hidden = relu(x @ W1 + b1), f32 accumulation on the MXU
    h = jnp.dot(x_ref[...], w1_ref[...], preferred_element_type=jnp.float32)
    h = jnp.maximum(h + b1_ref[...], 0.0)
    # BatchNorm1d (eval) already folded into W2/b2; Dropout(p=0.0) is identity.
    o = jnp.dot(h.astype(w2_ref.dtype), w2_ref[...],
                preferred_element_type=jnp.float32)
    o_ref[...] = o + b2_ref[...]


@functools.partial(jax.jit, static_argnames=("block_b", "use_bf16"))
def net_ann_forward(x, params, block_b=512, use_bf16=False):
    """x: (B, n_in) float32. Returns (B, n_out) float32.

    block_b: requested batch-tile size (rows). Sweep 256/512/1024 for large B.
             On v7x, pick block_b <= B/2 so both TensorCores get grid steps.
    use_bf16: cast matmul operands to bf16 (f32 accumulation). Recommended on
              v6e/v7x when MXU-bound; keep f32 if 1e-4 accuracy is required.
    """
    w1, b1, gamma, beta, run_mean, run_var, w2, b2 = (
        params["w1"], params["b1"], params["bn_gamma"], params["bn_beta"],
        params["bn_mean"], params["bn_var"], params["w2"], params["b2"],
    )
    eps = 1e-5
    B, n_in = x.shape
    hidden = w1.shape[1]
    n_out = w2.shape[1]

    # ---- Fold eval-mode BatchNorm1d into the second Linear (exact) ----------
    # y = (relu(h)*scale + shift) @ W2 + b2
    #   = relu(h) @ (scale[:,None]*W2) + (b2 + shift @ W2)
    inv_std = 1.0 / jnp.sqrt(run_var + eps)
    scale = gamma * inv_std
    shift = beta - run_mean * gamma * inv_std
    w2_f = (scale[:, None] * w2).astype(jnp.float32)
    b2_f = (b2 + shift @ w2).astype(jnp.float32)

    # ---- Lane-dense output: pad n_out up to a multiple of 128 ---------------
    n_out_pad = _round_up(max(n_out, 1), 128)
    if n_out_pad != n_out:
        w2_f = jnp.pad(w2_f, ((0, 0), (0, n_out_pad - n_out)))
        b2_f = jnp.pad(b2_f, ((0, n_out_pad - n_out),))

    # ---- Batch tiling: round to sublane multiple, pad remainder rows --------
    bb = min(block_b, _round_up(B, 8))
    bb = max(8, _round_up(bb, 8))
    B_pad = _round_up(B, bb)
    x_p = x.astype(jnp.float32)
    if B_pad != B:
        x_p = jnp.pad(x_p, ((0, B_pad - B), (0, 0)))
    grid = (B_pad // bb,)

    # ---- Operand dtypes ------------------------------------------------------
    mm_dtype = jnp.bfloat16 if use_bf16 else jnp.float32
    x_p = x_p.astype(mm_dtype)
    w1_p = w1.astype(mm_dtype)
    w2_p = w2_f.astype(mm_dtype)
    b1_2d = b1.reshape(1, hidden).astype(jnp.float32)
    b2_2d = b2_f.reshape(1, n_out_pad).astype(jnp.float32)

    out_pad = pl.pallas_call(
        _net_ann_kernel,
        out_shape=jax.ShapeDtypeStruct((B_pad, n_out_pad), jnp.float32),
        grid_spec=pltpu.PrefetchScalarGridSpec(
            num_scalar_prefetch=0,
            grid=grid,
            in_specs=[
                pl.BlockSpec((bb, n_in), lambda i: (i, 0)),          # x tile
                pl.BlockSpec((n_in, hidden), lambda i: (0, 0)),      # W1 (resident)
                pl.BlockSpec((1, hidden), lambda i: (0, 0)),         # b1
                pl.BlockSpec((hidden, n_out_pad), lambda i: (0, 0)), # W2 (BN folded)
                pl.BlockSpec((1, n_out_pad), lambda i: (0, 0)),      # b2 (BN folded)
            ],
            out_specs=pl.BlockSpec((bb, n_out_pad), lambda i: (i, 0)),
        ),
        compiler_params=pltpu.CompilerParams(
            dimension_semantics=("parallel",),
        ),
    )(x_p, w1_p, b1_2d, w2_p, b2_2d)

    return out_pad[:B, :n_out]


def init_params(key, n_in, n_out, hidden=256):
    """Deterministic init mimicking PyTorch defaults (uniform +/- 1/sqrt(fan_in))."""
    k1, k2, k3, k4, k5, k6 = jax.random.split(key, 6)
    bound1 = 1.0 / jnp.sqrt(jnp.float32(n_in))
    bound2 = 1.0 / jnp.sqrt(jnp.float32(hidden))
    return {
        # stored transposed vs. PyTorch: (n_in, hidden) and (hidden, n_out)
        "w1": jax.random.uniform(k1, (n_in, hidden), jnp.float32, -bound1, bound1),
        "b1": jax.random.uniform(k2, (hidden,), jnp.float32, -bound1, bound1),
        "w2": jax.random.uniform(k3, (hidden, n_out), jnp.float32, -bound2, bound2),
        "b2": jax.random.uniform(k4, (n_out,), jnp.float32, -bound2, bound2),
        # BatchNorm1d params + (non-trivial) running stats, eval mode
        "bn_gamma": jnp.ones((hidden,), jnp.float32),
        "bn_beta": jnp.zeros((hidden,), jnp.float32),
        "bn_mean": 0.1 * jax.random.normal(k5, (hidden,), jnp.float32),
        "bn_var": 1.0 + 0.1 * jax.random.uniform(k6, (hidden,), jnp.float32),
    }


def reference_forward(x, params):
    """Pure-JAX reference matching the PyTorch forward (eval mode)."""
    eps = 1e-5
    h = x @ params["w1"] + params["b1"]
    h = jnp.maximum(h, 0.0)
    h = (h - params["bn_mean"]) / jnp.sqrt(params["bn_var"] + eps)
    h = h * params["bn_gamma"] + params["bn_beta"]
    return h @ params["w2"] + params["b2"]


if __name__ == "__main__":
    key = jax.random.PRNGKey(0)
    kx, kp, kx2 = jax.random.split(key, 3)

    n_in, n_out = 32, 16
    params = init_params(kp, n_in, n_out)

    # Small single-tile case (f32 path, tight tolerance).
    B = 8
    x = jax.random.normal(kx, (B, n_in), jnp.float32)
    out = jax.block_until_ready(net_ann_forward(x, params, block_b=512))
    ref = reference_forward(x, params)
    assert out.shape == (B, n_out)
    assert jnp.allclose(out, ref, atol=1e-4, rtol=1e-4), "f32 small-batch mismatch"

    # Larger non-multiple batch: exercises remainder padding and a multi-step
    # 'parallel' grid (>= 2 steps so both v7x TensorCores get work).
    B2 = 1000
    x2 = jax.random.normal(kx2, (B2, n_in), jnp.float32)
    out2 = jax.block_until_ready(net_ann_forward(x2, params, block_b=256))
    ref2 = reference_forward(x2, params)
    assert out2.shape == (B2, n_out)
    assert jnp.allclose(out2, ref2, atol=1e-4, rtol=1e-4), "f32 tiled mismatch"

    # bf16-operand path (v6e/v7x MXU speedup), f32 accumulation — looser tolerance.
    out_bf16 = jax.block_until_ready(
        net_ann_forward(x2, params, block_b=256, use_bf16=True))
    max_err = float(jnp.max(jnp.abs(out_bf16 - ref2)))
    assert max_err < 1e-1, f"bf16 path error too large: {max_err}"

    print("KERNEL_OK")
</pallas_src>

<mosaic_0001>
module attributes {stable_mosaic.version = 11 : i64} {
  func.func @_net_ann_kernel(%arg0: i32, %arg1: memref<8x32xf32, #tpu.memory_space<vmem>>, %arg2: memref<32x256xf32, #tpu.memory_space<vmem>>, %arg3: memref<1x256xf32, #tpu.memory_space<vmem>>, %arg4: memref<256x128xf32, #tpu.memory_space<vmem>>, %arg5: memref<1x128xf32, #tpu.memory_space<vmem>>, %arg6: memref<8x128xf32, #tpu.memory_space<vmem>>) attributes {dimension_semantics = [#tpu.dimension_semantics<parallel>], iteration_bounds = array<i64: 1>, scalar_prefetch = 0 : i64, scratch_operands = 0 : i64, tpu.core_type = #tpu.core_type<tc>, window_params = [{transform_indices = @transform_0, window_bounds = array<i64: 8, 32>}, {pipeline_mode = #tpu.pipeline_mode<synchronous>, transform_indices = @transform_1, window_bounds = array<i64: 32, 256>}, {pipeline_mode = #tpu.pipeline_mode<synchronous>, transform_indices = @transform_2, window_bounds = array<i64: 1, 256>}, {pipeline_mode = #tpu.pipeline_mode<synchronous>, transform_indices = @transform_3, window_bounds = array<i64: 256, 128>}, {pipeline_mode = #tpu.pipeline_mode<synchronous>, transform_indices = @transform_4, window_bounds = array<i64: 1, 128>}, {transform_indices = @transform_5, window_bounds = array<i64: 8, 128>}]} {
    %c0 = arith.constant 0 : index
    %c0_0 = arith.constant 0 : index
    %0 = vector.load %arg1[%c0, %c0_0] : memref<8x32xf32, #tpu.memory_space<vmem>>, vector<8x32xf32>
    %c0_1 = arith.constant 0 : index
    %c0_2 = arith.constant 0 : index
    %1 = vector.load %arg2[%c0_1, %c0_2] : memref<32x256xf32, #tpu.memory_space<vmem>>, vector<32x256xf32>
    %cst = arith.constant dense<0.000000e+00> : vector<8x256xf32>
    %2 = tpu.matmul %0, %1, %cst {dimension_numbers = #tpu.dot_dimension_numbers<[1], [0], [0], [1], [0, 0, 1, 1], [], []>} : vector<8x32xf32>, vector<32x256xf32>, vector<8x256xf32> -> vector<8x256xf32>
    %c0_3 = arith.constant 0 : index
    %c0_4 = arith.constant 0 : index
    %3 = vector.load %arg3[%c0_3, %c0_4] : memref<1x256xf32, #tpu.memory_space<vmem>>, vector<1x256xf32>
    %4 = vector.broadcast %3 : vector<1x256xf32> to vector<8x256xf32>
    %5 = arith.addf %2, %4 : vector<8x256xf32>
    %cst_5 = arith.constant 0.000000e+00 : f32
    %6 = vector.broadcast %cst_5 : f32 to vector<8x256xf32>
    %7 = arith.maximumf %5, %6 : vector<8x256xf32>
    %c0_6 = arith.constant 0 : index
    %c0_7 = arith.constant 0 : index
    %8 = vector.load %arg4[%c0_6, %c0_7] : memref<256x128xf32, #tpu.memory_space<vmem>>, vector<256x128xf32>
    %cst_8 = arith.constant dense<0.000000e+00> : vector<8x128xf32>
    %9 = tpu.matmul %7, %8, %cst_8 {dimension_numbers = #tpu.dot_dimension_numbers<[1], [0], [0], [1], [0, 0, 1, 1], [], []>} : vector<8x256xf32>, vector<256x128xf32>, vector<8x128xf32> -> vector<8x128xf32>
    %c0_9 = arith.constant 0 : index
    %c0_10 = arith.constant 0 : index
    %10 = vector.load %arg5[%c0_9, %c0_10] : memref<1x128xf32, #tpu.memory_space<vmem>>, vector<1x128xf32>
    %11 = vector.broadcast %10 : vector<1x128xf32> to vector<8x128xf32>
    %12 = arith.addf %9, %11 : vector<8x128xf32>
    %c0_11 = arith.constant 0 : index
    %c0_12 = arith.constant 0 : index
    %13 = vector.load %arg6[%c0_11, %c0_12] : memref<8x128xf32, #tpu.memory_space<vmem>>, vector<8x128xf32>
    tpu.vector_store %arg6[%c0_11, %c0_12], %12 {strides = array<i32>} : memref<8x128xf32, #tpu.memory_space<vmem>>, vector<8x128xf32>,
    return
  }
  func.func @transform_0(%arg0: i32) -> (i32, i32) {
    %c0_i32 = arith.constant 0 : i32
    %c0_i32_0 = arith.constant 0 : i32
    return %arg0, %c0_i32 : i32, i32
  }
  func.func @transform_1(%arg0: i32) -> (i32, i32) {
    %c0_i32 = arith.constant 0 : i32
    %c0_i32_0 = arith.constant 0 : i32
    %c0_i32_1 = arith.constant 0 : i32
    return %c0_i32, %c0_i32_0 : i32, i32
  }
  func.func @transform_2(%arg0: i32) -> (i32, i32) {
    %c0_i32 = arith.constant 0 : i32
    %c0_i32_0 = arith.constant 0 : i32
    %c0_i32_1 = arith.constant 0 : i32
    return %c0_i32, %c0_i32_0 : i32, i32
  }
  func.func @transform_3(%arg0: i32) -> (i32, i32) {
    %c0_i32 = arith.constant 0 : i32
    %c0_i32_0 = arith.constant 0 : i32
    %c0_i32_1 = arith.constant 0 : i32
    return %c0_i32, %c0_i32_0 : i32, i32
  }
  func.func @transform_4(%arg0: i32) -> (i32, i32) {
    %c0_i32 = arith.constant 0 : i32
    %c0_i32_0 = arith.constant 0 : i32
    %c0_i32_1 = arith.constant 0 : i32
    return %c0_i32, %c0_i32_0 : i32, i32
  }
  func.func @transform_5(%arg0: i32) -> (i32, i32) {
    %c0_i32 = arith.constant 0 : i32
    %c0_i32_0 = arith.constant 0 : i32
    return %arg0, %c0_i32 : i32, i32
  }
}

</mosaic_0001>

<llo_original>
// kernel: net_ann_forward.1
$region0: #{net_ann_forward.1}
  #allocation0 [shape = 'u32[]', space=smem, size = 0x4, offset = 0x4, fixed_abs, tag = 'smem constant byte address 0x4 - core index']
  #allocation1 [shape = 'u32[144,128]{1,0:T(1,128)}', space=vmem, size = 0x12000, scoped, tag = 'internal scratch']
  %s0 = inlined_call_operand.vmem [shape: f32[8,32], index: 0, kind: input, shape index: {}]
  %s1 = inlined_call_operand.vmem [shape: f32[32,256], index: 1, kind: input, shape index: {}]
  %s2 = inlined_call_operand.vmem [shape: f32[1,256], index: 2, kind: input, shape index: {}]
  %s3 = inlined_call_operand.vmem [shape: f32[256,128], index: 3, kind: input, shape index: {}]
  %s4 = inlined_call_operand.vmem [shape: f32[1,128], index: 4, kind: input, shape index: {}]
  %s5 = inlined_call_operand.hbm [shape: f32[8,128], index: 5, kind: output, shape index: {}]
  %s6 = sld [smem:[#allocation0]]
  $region30: #{net_ann_forward.1} parent=0
    _
  %s8 = ssub.s32 1, %s6
  %s9 = scalar_select 0, %s8, %s6
  $region1: #{net_ann_forward.1} parent=0
    #allocation2 [shape = 'u8[4096]{0}', space=vmem, size = 0x1000, scoped, tag = 'output window, operand 0, single buffered']
    #allocation3 [shape = 's32[1]{0}', space=sflag, size = 0x4, scoped, tag = 'scoped memory for net_ann_forward.1']
    %10 = vsyncpa [#allocation3], 0
    // Predicated region
    $region2: #{net_ann_forward.1} parent=1 // pred_check
      _
    $region3: #{net_ann_forward.1} parent=1 // pred_check_branch
      %12 = sbr.rel (0) target = $region5
    $region4: #{net_ann_forward.1} parent=1 // pred_region
      _
    $region5: #{net_ann_forward.1} parent=1 // pred_fallthru
      _
    // Predicated region
    $region6: #{net_ann_forward.1} parent=1 // pred_check
      _
    $region7: #{net_ann_forward.1} parent=1 // pred_check_branch
      %14 = sbr.rel (0) target = $region9
    $region8: #{net_ann_forward.1} parent=1 // pred_region
      _
    $region9: #{net_ann_forward.1} parent=1 // pred_fallthru
      _
    // Predicated region
    $region10: #{net_ann_forward.1} parent=1 // pred_check
      _
    $region11: #{net_ann_forward.1} parent=1 // pred_check_branch
      %16 = sbr.rel (0) target = $region13
    $region12: #{net_ann_forward.1} parent=1 // pred_region
      _
    $region13: #{net_ann_forward.1} parent=1 // pred_fallthru
      _
    // Predicated region
    $region14: #{net_ann_forward.1} parent=1 // pred_check
      _
    $region15: #{net_ann_forward.1} parent=1 // pred_check_branch
      %18 = sbr.rel (0) target = $region17
    $region16: #{net_ann_forward.1} parent=1 // pred_region
      _
    $region17: #{net_ann_forward.1} parent=1 // pred_fallthru
      _
    // Predicated region
    $region18: #{net_ann_forward.1} parent=1 // pred_check
      _
    $region19: #{net_ann_forward.1} parent=1 // pred_check_branch
      %20 = sbr.rel (0) target = $region21
    $region20: #{net_ann_forward.1} parent=1 // pred_region
      _
    $region21: #{net_ann_forward.1} parent=1 // pred_fallthru
      _
    %v21 = vld [vmem:[%s0] sm:$0xff]
    %v22 = vld [vmem:[%s1] sm:$0xff]
    %v23 = vld [vmem:[%s1 + $0x8] sm:$0xff]
    %v24 = vld [vmem:[%s1 + $0x10] sm:$0xff]
    %v25 = vld [vmem:[%s1 + $0x18] sm:$0xff]
    %v26 = vld [vmem:[%s1 + $0x20] sm:$0xff]
    %v27 = vld [vmem:[%s1 + $0x28] sm:$0xff]
    %v28 = vld [vmem:[%s1 + $0x30] sm:$0xff]
    %v29 = vld [vmem:[%s1 + $0x38] sm:$0xff]
    %v30 = vld [vmem:[%s2] sm:$0x3]
    %v32 = vlaneseq
    %v33 = vshrl.u32 %v32, 7
    %v34 = vsub.s32 0, %v33
    %v35 = vrot.slane %v30, %v34
    %v36 = vlaneseq
    %v37 = vshrl.u32 %v36, 7
    %v38 = vsub.s32 1, %v37
    %v39 = vrot.slane %v30, %v38
    %vm42 = vcmask 261120
    %v44 = vsel %vm42, %v21, 0
    %46 = vmatprep.subr.mxu0 %v23
    %47 = vmatpush1.msra.mxu0 %v22
    %48 = vmatprep.subr.mxu0 %v25
    %49 = vmatpush1.msra.mxu0 %v24
    %50 = vmatprep.subr.mxu0 %v27
    %51 = vmatpush1.msra.mxu0 %v26
    %52 = vmatprep.subr.mxu0 %v29
    %53 = vmatpush1.msra.mxu0 %v28
    %54 = vmatprep.subr.mxu0 0.0
    %55 = vmatpush1.msra.mxu0 0.0
    %56 = vmatprep.subr.mxu0 0.0
    %57 = vmatpush1.msra.mxu0 0.0
    %58 = vmatprep.subr.mxu0 0.0
    %59 = vmatpush1.msra.mxu0 0.0
    %60 = vmatprep.subr.mxu0 0.0
    %61 = vmatpush1.msra.mxu0 0.0
    %62 = vmatprep.subr.mxu0 0.0
    %63 = vmatpush1.msra.mxu0 0.0
    %64 = vmatprep.subr.mxu0 0.0
    %65 = vmatpush1.msra.mxu0 0.0
    %66 = vmatprep.subr.mxu0 0.0
    %67 = vmatpush1.msra.mxu0 0.0
    %68 = vmatprep.subr.mxu0 0.0
    %69 = vmatpush1.msra.mxu0 0.0
    %70 = vmatprep.subr.mxu0 0.0
    %71 = vmatpush1.msra.mxu0 0.0
    %72 = vmatprep.subr.mxu0 0.0
    %73 = vmatpush1.msra.mxu0 0.0
    %74 = vmatprep.subr.mxu0 0.0
    %75 = vmatpush1.msra.mxu0 0.0
    %76 = vmatprep.subr.mxu0 0.0
    %77 = vmatpush1.msra.mxu0 0.0
    %78 = vmatprep.subr.mxu0 0.0
    %79 = vmatpush1.msra.mxu0 0.0
    %80 = vmatprep.subr.mxu0 0.0
    %81 = vmatpush1.msra.mxu0 0.0
    %82 = vmatprep.subr.mxu0 0.0
    %83 = vmatpush1.msra.mxu0 0.0
    %84 = vmatprep.subr.mxu0 0.0
    %85 = vmatpush1.msra.mxu0 0.0
    %86 = vmatprep.subr.mxu0 0.0
    %87 = vmatpush1.msra.mxu0 0.0
    %88 = vmatprep.subr.mxu0 0.0
    %89 = vmatpush1.msra.mxu0 0.0
    %90 = vmatprep.subr.mxu0 0.0
    %91 = vmatpush1.msra.mxu0 0.0
    %92 = vmatprep.subr.mxu0 0.0
    %93 = vmatpush1.msra.mxu0 0.0
    %94 = vmatprep.subr.mxu0 0.0
    %95 = vmatpush1.msra.mxu0 0.0
    %96 = vmatprep.subr.mxu0 0.0
    %97 = vmatpush1.msra.mxu0 0.0
    %98 = vmatprep.subr.mxu0 0.0
    %99 = vmatpush1.msra.mxu0 0.0
    %100 = vmatprep.subr.mxu0 0.0
    %101 = vmatpush1.msra.mxu0 0.0
    %102 = vmatprep.subr.mxu0 0.0
    %103 = vmatpush1.msra.mxu0 0.0
    %104 = vmatprep.subr.mxu0 0.0
    %105 = vmatpush1.msra.mxu0 0.0
    %106 = vmatprep.subr.mxu0 0.0
    %107 = vmatpush1.msra.mxu0 0.0
    %108 = vmatprep.subr.mxu0 0.0
    %109 = vmatpush1.msra.mxu0 0.0
    %110 = vmatprep.mubr.f32.mxu0 0.0
    %111 = vmatmul.mubr.f32.gmra.mrb[0].mxu0 %v44
    %v112 = vpop.f32.mrb[0].mxu0
    %v113 = vadd.f32 %v35, %v112
    %v114 = vpop.f32.mrb[0].mxu0
    %v115 = vadd.f32 %v39, %v114
    %116 = vdwg.mxu0
    %v117 = vmax.f32 %v113, 0.0
    %v118 = vmax.f32 %v115, 0.0
    %v119 = vld [vmem:[%s3] sm:$0xff]
    %v120 = vld [vmem:[%s3 + $0x8] sm:$0xff]
    %v121 = vld [vmem:[%s3 + $0x10] sm:$0xff]
    %v122 = vld [vmem:[%s3 + $0x18] sm:$0xff]
    %v123 = vld [vmem:[%s3 + $0x20] sm:$0xff]
    %v124 = vld [vmem:[%s3 + $0x28] sm:$0xff]
    %v125 = vld [vmem:[%s3 + $0x30] sm:$0xff]
    %v126 = vld [vmem:[%s3 + $0x38] sm:$0xff]
    %v127 = vld [vmem:[%s3 + $0x40] sm:$0xff]
    %v128 = vld [vmem:[%s3 + $0x48] sm:$0xff]
    %v129 = vld [vmem:[%s3 + $0x50] sm:$0xff]
    %v130 = vld [vmem:[%s3 + $0x58] sm:$0xff]
    %v131 = vld [vmem:[%s3 + $0x60] sm:$0xff]
    %v132 = vld [vmem:[%s3 + $0x68] sm:$0xff]
    %v133 = vld [vmem:[%s3 + $0x70] sm:$0xff]
    %v134 = vld [vmem:[%s3 + $0x78] sm:$0xff]
    %v135 = vld [vmem:[%s3 + $0x80] sm:$0xff]
    %v136 = vld [vmem:[%s3 + $0x88] sm:$0xff]
    %v137 = vld [vmem:[%s3 + $0x90] sm:$0xff]
    %v138 = vld [vmem:[%s3 + $0x98] sm:$0xff]
    %v139 = vld [vmem:[%s3 + $0xa0] sm:$0xff]
    %v140 = vld [vmem:[%s3 + $0xa8] sm:$0xff]
    %v141 = vld [vmem:[%s3 + $0xb0] sm:$0xff]
    %v142 = vld [vmem:[%s3 + $0xb8] sm:$0xff]
    %v143 = vld [vmem:[%s3 + $0xc0] sm:$0xff]
    %v144 = vld [vmem:[%s3 + $0xc8] sm:$0xff]
    %v145 = vld [vmem:[%s3 + $0xd0] sm:$0xff]
    %v146 = vld [vmem:[%s3 + $0xd8] sm:$0xff]
    %v147 = vld [vmem:[%s3 + $0xe0] sm:$0xff]
    %v148 = vld [vmem:[%s3 + $0xe8] sm:$0xff]
    %v149 = vld [vmem:[%s3 + $0xf0] sm:$0xff]
    %v150 = vld [vmem:[%s3 + $0xf8] sm:$0xff]
    %v151 = vld [vmem:[%s4] sm:$0x1]
    %v153 = vlaneseq
    %v154 = vshrl.u32 %v153, 7
    %v155 = vsub.s32 0, %v154
    %v156 = vrot.slane %v151, %v155
    %158 = vmatprep.subr.mxu0 0.0
    %159 = vmatpush1.msra.mxu0 %v119
    %160 = vmatprep.subr.mxu0 0.0
    %161 = vmatpush1.msra.mxu0 %v120
    %162 = vmatprep.subr.mxu0 0.0
    %163 = vmatpush1.msra.mxu0 %v121
    %164 = vmatprep.subr.mxu0 0.0
    %165 = vmatpush1.msra.mxu0 %v122
    %166 = vmatprep.subr.mxu0 0.0
    %167 = vmatpush1.msra.mxu0 %v123
    %168 = vmatprep.subr.mxu0 0.0
    %169 = vmatpush1.msra.mxu0 %v124
    %170 = vmatprep.subr.mxu0 0.0
    %171 = vmatpush1.msra.mxu0 %v125
    %172 = vmatprep.subr.mxu0 0.0
    %173 = vmatpush1.msra.mxu0 %v126
    %174 = vmatprep.subr.mxu0 0.0
    %175 = vmatpush1.msra.mxu0 %v127
    %176 = vmatprep.subr.mxu0 0.0
    %177 = vmatpush1.msra.mxu0 %v128
    %178 = vmatprep.subr.mxu0 0.0
    %179 = vmatpush1.msra.mxu0 %v129
    %180 = vmatprep.subr.mxu0 0.0
    %181 = vmatpush1.msra.mxu0 %v130
    %182 = vmatprep.subr.mxu0 0.0
    %183 = vmatpush1.msra.mxu0 %v131
    %184 = vmatprep.subr.mxu0 0.0
    %185 = vmatpush1.msra.mxu0 %v132
    %186 = vmatprep.subr.mxu0 0.0
    %187 = vmatpush1.msra.mxu0 %v133
    %188 = vmatprep.subr.mxu0 0.0
    %189 = vmatpush1.msra.mxu0 %v134
    %190 = vmatprep.subr.mxu0 0.0
    %191 = vmatpush1.msra.mxu0 %v135
    %192 = vmatprep.subr.mxu0 0.0
    %193 = vmatpush1.msra.mxu0 %v136
    %194 = vmatprep.subr.mxu0 0.0
    %195 = vmatpush1.msra.mxu0 %v137
    %196 = vmatprep.subr.mxu0 0.0
    %197 = vmatpush1.msra.mxu0 %v138
    %198 = vmatprep.subr.mxu0 0.0
    %199 = vmatpush1.msra.mxu0 %v139
    %200 = vmatprep.subr.mxu0 0.0
    %201 = vmatpush1.msra.mxu0 %v140
    %202 = vmatprep.subr.mxu0 0.0
    %203 = vmatpush1.msra.mxu0 %v141
    %204 = vmatprep.subr.mxu0 0.0
    %205 = vmatpush1.msra.mxu0 %v142
    %206 = vmatprep.subr.mxu0 0.0
    %207 = vmatpush1.msra.mxu0 %v143
    %208 = vmatprep.subr.mxu0 0.0
    %209 = vmatpush1.msra.mxu0 %v144
    %210 = vmatprep.subr.mxu0 0.0
    %211 = vmatpush1.msra.mxu0 %v145
    %212 = vmatprep.subr.mxu0 0.0
    %213 = vmatpush1.msra.mxu0 %v146
    %214 = vmatprep.subr.mxu0 0.0
    %215 = vmatpush1.msra.mxu0 %v147
    %216 = vmatprep.subr.mxu0 0.0
    %217 = vmatpush1.msra.mxu0 %v148
    %218 = vmatprep.subr.mxu0 0.0
    %219 = vmatpush1.msra.mxu0 %v149
    %220 = vmatprep.subr.mxu0 0.0
    %221 = vmatpush1.msra.mxu0 %v150
    %222 = vmatprep.mubr.f32.mxu0 %v118
    %223 = vmatmul.mubr.f32.gmra.mrb[0].mxu0 %v117
    %v224 = vpop.f32.mrb[0].mxu0
    %v225 = vadd.f32 %v156, %v224
    %v226 = vpop.f32.mrb[0].mxu0
    %227 = vdwg.mxu0
    %228 = vst [vmem:[#allocation2] sm:$0xff] %v225
    // Predicated region
    $region22: #{net_ann_forward.1} parent=1 // pred_check
      _
    $region23: #{net_ann_forward.1} parent=1 // pred_check_branch
      %230 = sbr.rel (0) target = $region25
    $region24: #{net_ann_forward.1} parent=1 // pred_region
      %s232 = ssub.s32 128, 128
      %233 = vsyncadd [#allocation3], %s232
      %s235 = sshll.u32 [#allocation2], 4
      %s236 = int_to_ptr.vmem [resolvable:$true] %s235
      %238 = dma.vmem_to_hbm [thread:$0]  %s236, 128, %s5, [#allocation3]
    $region25: #{net_ann_forward.1} parent=1 // pred_fallthru
      _
    // Predicated region
    $region26: #{net_ann_forward.1} parent=1 // pred_check
      _
    $region27: #{net_ann_forward.1} parent=1 // pred_check_branch
      %240 = sbr.rel (0) target = $region29
    $region28: #{net_ann_forward.1} parent=1 // pred_region
      %241 = dma.done [#allocation3], 128
    $region29: #{net_ann_forward.1} parent=1 // pred_fallthru
      _
    %242 = vsyncpa [#allocation3], 1

</llo_original>
